<compile_context>
chip_gen: v7x
topology: tpu7x:2x2x1
jax: 0.10.0
libtpu: 0.0.40
codegen_flags: <defaults>
</compile_context>

<pallas_src>
import functools

import jax
import jax.numpy as jnp
from jax.experimental import pallas as pl
from jax.experimental.pallas import tpu as pltpu


def _round_up(x, m):
    return ((x + m - 1) // m) * m


def abmil_kernel(bag_ref, w1_ref, b1_ref, w2_ref, wp_ref, bp_ref, out_ref,
                 acc_ref, m_ref, l_ref, *, n_valid, tile_n):
    k = pl.program_id(1)

    @pl.when(k == 0)
    def _init():
        m_ref[...] = jnp.full_like(m_ref, -jnp.inf)
        l_ref[...] = jnp.zeros_like(l_ref)
        acc_ref[...] = jnp.zeros_like(acc_ref)

    bag_bf = bag_ref[0]                                        # (TN, E) bf16

    # Attention MLP: Linear(E->H) -> tanh.  bf16 MXU operands, f32 accumulation.
    h = jnp.tanh(
        jnp.dot(bag_bf, w1_ref[...], preferred_element_type=jnp.float32)
        + b1_ref[...]
    )                                                          # (TN, H) f32

    # H->1 projection as VPU multiply + lane reduction (w2 stored as a (1, H) row).
    # The H->1 bias is dropped: a constant logit offset cancels in the softmax.
    a = jnp.sum(h * w2_ref[...], axis=1, keepdims=True)        # (TN, 1) f32

    # Mask rows that are only padding (bag padded up to a multiple of tile_n).
    if n_valid % tile_n != 0:
        rows = k * tile_n + jax.lax.broadcasted_iota(jnp.int32, (tile_n, 1), 0)
        a = jnp.where(rows < n_valid, a, -jnp.inf)

    # One-pass (online) softmax over the bag axis fused with the weighted pooling.
    m_new = jnp.maximum(m_ref[...], jnp.max(a, axis=0, keepdims=True))   # (1, 1)
    alpha = jnp.exp(m_ref[...] - m_new)                                  # (1, 1)
    p = jnp.exp(a - m_new)                                               # (TN, 1)
    l_ref[...] = alpha * l_ref[...] + jnp.sum(p, axis=0, keepdims=True)
    acc_ref[...] = alpha * acc_ref[...] + jnp.sum(
        p * bag_bf.astype(jnp.float32), axis=0, keepdims=True)           # (1, E)
    m_ref[...] = m_new

    @pl.when(k == pl.num_programs(1) - 1)
    def _finalize():
        # Normalize (EUP approx reciprocal) and apply the output projection.
        z = acc_ref[...] * pl.reciprocal(l_ref[...], approx=True)        # (1, E)
        out = jnp.dot(z.astype(jnp.bfloat16), wp_ref[...],
                      preferred_element_type=jnp.float32) + bp_ref[...]  # (1, O)
        out_ref[0] = out


def abmil_forward(bag, w1, b1, w2, wp, bp, *, tile_n=512):
    """Batched ABMIL forward.  bag: (B, N, E) f32 -> (B, O) f32."""
    B, N, E = bag.shape
    H = w1.shape[1]
    O = wp.shape[1]

    # bf16 MXU / streamed operands (f32 accumulation in-kernel); rest stays f32.
    bag_bf = bag.astype(jnp.bfloat16)
    w1_bf = w1.astype(jnp.bfloat16)
    wp_bf = wp.astype(jnp.bfloat16)
    w2_row = jnp.reshape(w2, (1, H)).astype(jnp.float32)
    b1 = jnp.reshape(b1, (1, H)).astype(jnp.float32)
    bp = jnp.reshape(bp, (1, O)).astype(jnp.float32)

    # Row-tile size: multiple of 8 sublanes, no larger than the (padded) bag.
    tile_n = _round_up(min(tile_n, _round_up(N, 8)), 8)
    k_steps = pl.cdiv(N, tile_n)
    n_pad = k_steps * tile_n
    if n_pad != N:
        bag_bf = jnp.pad(bag_bf, ((0, 0), (0, n_pad - N), (0, 0)))

    kernel = functools.partial(abmil_kernel, n_valid=N, tile_n=tile_n)

    grid_spec = pltpu.PrefetchScalarGridSpec(
        num_scalar_prefetch=0,
        grid=(B, k_steps),
        in_specs=[
            # Bag: one (tile_n, E) tile per (bag, row-tile) grid step (streamed).
            pl.BlockSpec((1, tile_n, E), lambda b, k: (b, k, 0)),
            # Weights / biases: full arrays, resident across the whole grid.
            pl.BlockSpec((E, H), lambda b, k: (0, 0)),
            pl.BlockSpec((1, H), lambda b, k: (0, 0)),
            pl.BlockSpec((1, H), lambda b, k: (0, 0)),
            pl.BlockSpec((E, O), lambda b, k: (0, 0)),
            pl.BlockSpec((1, O), lambda b, k: (0, 0)),
        ],
        out_specs=pl.BlockSpec((1, 1, O), lambda b, k: (b, 0, 0)),
        scratch_shapes=[
            pltpu.VMEM((1, E), jnp.float32),   # acc: exp-weighted pooled features
            pltpu.VMEM((1, 1), jnp.float32),   # m: running max logit
            pltpu.VMEM((1, 1), jnp.float32),   # l: running softmax denominator
        ],
    )

    out = pl.pallas_call(
        kernel,
        out_shape=jax.ShapeDtypeStruct((B, 1, O), jnp.float32),
        grid_spec=grid_spec,
        compiler_params=pltpu.CompilerParams(
            dimension_semantics=("parallel", "arbitrary"),
            vmem_limit_bytes=32 * 1024 * 1024,
        ),
    )(bag_bf, w1_bf, b1, w2_row, wp_bf, bp)
    return out.reshape(B, O)


def _uniform(key, shape, bound):
    return jax.random.uniform(key, shape, jnp.float32, minval=-bound, maxval=bound)


def _reference(bag, w1, b1, w2, b2, wp, bp):
    """Pure-JAX ABMIL reference mirroring the PyTorch module, using the same bf16
    rounding of bag/w1/wp as the kernel (HIGHEST precision => exact f32 accumulate)."""
    hi = jax.lax.Precision.HIGHEST
    bag_bf = bag.astype(jnp.bfloat16).astype(jnp.float32)
    w1_bf = w1.astype(jnp.bfloat16).astype(jnp.float32)
    wp_bf = wp.astype(jnp.bfloat16).astype(jnp.float32)

    def one(bag_i):                                              # bag_i: (N, E)
        h = jnp.tanh(jnp.dot(bag_i, w1_bf, precision=hi) + b1)   # (N, H)
        a = jnp.dot(h, w2, precision=hi) + b2                    # (N, 1); b2 cancels in softmax
        w = jax.nn.softmax(a, axis=0)
        z = jnp.sum(w * bag_i, axis=0, keepdims=True)            # (1, E)
        z_bf = z.astype(jnp.bfloat16).astype(jnp.float32)
        return (jnp.dot(z_bf, wp_bf, precision=hi) + bp)[0]      # (O,)

    return jax.vmap(one)(bag_bf)


if __name__ == "__main__":
    # Small shapes consistent with the module (module: E=1024, H=512, O=256;
    # scaled down, lane dims kept at multiples of 128).  N is deliberately not a
    # multiple of the row tile so the padding/mask path is exercised:
    # tile_n=64 -> 4 streamed tiles per bag, last tile has 8 valid rows.
    B, N, E, H, O = 8, 200, 256, 128, 128

    key = jax.random.PRNGKey(0)
    k_bag, k_w1, k_b1, k_w2, k_b2, k_wp, k_bp = jax.random.split(key, 7)

    bag = jax.random.normal(k_bag, (B, N, E), jnp.float32)

    # PyTorch-style init (uniform +-1/sqrt(fan_in)); weights stored (in, out).
    w1 = _uniform(k_w1, (E, H), 1.0 / (E ** 0.5))
    b1 = _uniform(k_b1, (1, H), 1.0 / (E ** 0.5))
    w2 = _uniform(k_w2, (H, 1), 1.0 / (H ** 0.5))
    b2 = _uniform(k_b2, (1, 1), 1.0 / (H ** 0.5))   # reference only: the kernel
    # drops b2 because a constant logit offset cancels in softmax(dim=0).
    wp = _uniform(k_wp, (E, O), 1.0 / (E ** 0.5))
    bp = _uniform(k_bp, (1, O), 1.0 / (E ** 0.5))

    out = abmil_forward(bag, w1, b1, w2, wp, bp, tile_n=64)
    out = jax.block_until_ready(out)

    ref = _reference(bag, w1, b1, w2, b2, wp, bp)
    assert out.shape == (B, O)
    assert jnp.allclose(out, ref, atol=1e-3, rtol=1e-3), (
        "mismatch vs JAX reference: max abs diff "
        f"{float(jnp.max(jnp.abs(out - ref)))}"
    )

    print("KERNEL_OK")
</pallas_src>

<mosaic_0001>
module attributes {stable_mosaic.version = 11 : i64} {
  func.func @abmil_kernel(%arg0: i32, %arg1: i32, %arg2: memref<1x64x256xbf16, #tpu.memory_space<vmem>>, %arg3: memref<256x128xbf16, #tpu.memory_space<vmem>>, %arg4: memref<1x128xf32, #tpu.memory_space<vmem>>, %arg5: memref<1x128xf32, #tpu.memory_space<vmem>>, %arg6: memref<256x128xbf16, #tpu.memory_space<vmem>>, %arg7: memref<1x128xf32, #tpu.memory_space<vmem>>, %arg8: memref<1x1x128xf32, #tpu.memory_space<vmem>>, %arg9: memref<1x256xf32, #tpu.memory_space<vmem>>, %arg10: memref<1x1xf32, #tpu.memory_space<vmem>>, %arg11: memref<1x1xf32, #tpu.memory_space<vmem>>) attributes {dimension_semantics = [#tpu.dimension_semantics<parallel>, #tpu.dimension_semantics<arbitrary>], iteration_bounds = array<i64: 8, 4>, scalar_prefetch = 0 : i64, scratch_operands = 3 : i64, tpu.core_type = #tpu.core_type<tc>, window_params = [{transform_indices = @transform_0, window_bounds = array<i64: 1, 64, 256>}, {pipeline_mode = #tpu.pipeline_mode<synchronous>, transform_indices = @transform_1, window_bounds = array<i64: 256, 128>}, {pipeline_mode = #tpu.pipeline_mode<synchronous>, transform_indices = @transform_2, window_bounds = array<i64: 1, 128>}, {pipeline_mode = #tpu.pipeline_mode<synchronous>, transform_indices = @transform_3, window_bounds = array<i64: 1, 128>}, {pipeline_mode = #tpu.pipeline_mode<synchronous>, transform_indices = @transform_4, window_bounds = array<i64: 256, 128>}, {pipeline_mode = #tpu.pipeline_mode<synchronous>, transform_indices = @transform_5, window_bounds = array<i64: 1, 128>}, {transform_indices = @transform_6, window_bounds = array<i64: 1, 1, 128>}]} {
    %c0_i32 = arith.constant 0 : i32
    %0 = arith.cmpi eq, %arg1, %c0_i32 : i32
    %1 = arith.extui %0 : i1 to i32
    %c0_i32_0 = arith.constant 0 : i32
    %2 = arith.cmpi ne, %1, %c0_i32_0 : i32
    scf.if %2 {
      %cst_29 = arith.constant 0xFF800000 : f32
      %54 = vector.broadcast %cst_29 : f32 to vector<1x1xf32>
      %c0_30 = arith.constant 0 : index
      %c0_31 = arith.constant 0 : index
      %55 = vector.load %arg10[%c0_30, %c0_31] : memref<1x1xf32, #tpu.memory_space<vmem>>, vector<1x1xf32>
      tpu.vector_store %arg10[%c0_30, %c0_31], %54 {strides = array<i32>} : memref<1x1xf32, #tpu.memory_space<vmem>>, vector<1x1xf32>,
      %cst_32 = arith.constant 0.000000e+00 : f32
      %56 = vector.broadcast %cst_32 : f32 to vector<1x1xf32>
      %c0_33 = arith.constant 0 : index
      %c0_34 = arith.constant 0 : index
      %57 = vector.load %arg11[%c0_33, %c0_34] : memref<1x1xf32, #tpu.memory_space<vmem>>, vector<1x1xf32>
      tpu.vector_store %arg11[%c0_33, %c0_34], %56 {strides = array<i32>} : memref<1x1xf32, #tpu.memory_space<vmem>>, vector<1x1xf32>,
      %cst_35 = arith.constant 0.000000e+00 : f32
      %58 = vector.broadcast %cst_35 : f32 to vector<1x256xf32>
      %c0_36 = arith.constant 0 : index
      %c0_37 = arith.constant 0 : index
      %59 = vector.load %arg9[%c0_36, %c0_37] : memref<1x256xf32, #tpu.memory_space<vmem>>, vector<1x256xf32>
      tpu.vector_store %arg9[%c0_36, %c0_37], %58 {strides = array<i32>} : memref<1x256xf32, #tpu.memory_space<vmem>>, vector<1x256xf32>,
    } else {
    }
    %c0 = arith.constant 0 : index
    %c0_1 = arith.constant 0 : index
    %c0_2 = arith.constant 0 : index
    %3 = vector.load %arg2[%c0, %c0_1, %c0_2] : memref<1x64x256xbf16, #tpu.memory_space<vmem>>, vector<1x64x256xbf16>
    %4 = vector.shape_cast %3 : vector<1x64x256xbf16> to vector<64x256xbf16>
    %c0_3 = arith.constant 0 : index
    %c0_4 = arith.constant 0 : index
    %5 = vector.load %arg3[%c0_3, %c0_4] : memref<256x128xbf16, #tpu.memory_space<vmem>>, vector<256x128xbf16>
    %cst = arith.constant dense<0.000000e+00> : vector<64x128xf32>
    %6 = tpu.matmul %4, %5, %cst {dimension_numbers = #tpu.dot_dimension_numbers<[1], [0], [0], [1], [0, 0, 1, 1], [], []>} : vector<64x256xbf16>, vector<256x128xbf16>, vector<64x128xf32> -> vector<64x128xf32>
    %c0_5 = arith.constant 0 : index
    %c0_6 = arith.constant 0 : index
    %7 = vector.load %arg4[%c0_5, %c0_6] : memref<1x128xf32, #tpu.memory_space<vmem>>, vector<1x128xf32>
    %8 = vector.broadcast %7 : vector<1x128xf32> to vector<64x128xf32>
    %9 = arith.addf %6, %8 : vector<64x128xf32>
    %10 = math.tanh %9 : vector<64x128xf32>
    %c0_7 = arith.constant 0 : index
    %c0_8 = arith.constant 0 : index
    %11 = vector.load %arg5[%c0_7, %c0_8] : memref<1x128xf32, #tpu.memory_space<vmem>>, vector<1x128xf32>
    %12 = vector.broadcast %11 : vector<1x128xf32> to vector<64x128xf32>
    %13 = arith.mulf %10, %12 : vector<64x128xf32>
    %cst_9 = arith.constant dense<0.000000e+00> : vector<64xf32>
    %14 = vector.multi_reduction <add>, %13, %cst_9 [1] : vector<64x128xf32> to vector<64xf32>
    %15 = vector.shape_cast %14 : vector<64xf32> to vector<64x1xf32>
    %c64_i32 = arith.constant 64 : i32
    %16 = arith.muli %arg1, %c64_i32 : i32
    %17 = tpu.iota {dimensions = array<i32: 0>} : vector<64x1xi32>
    %18 = vector.broadcast %16 : i32 to vector<64x1xi32>
    %19 = arith.addi %18, %17 : vector<64x1xi32>
    %c200_i32 = arith.constant 200 : i32
    %20 = vector.broadcast %c200_i32 : i32 to vector<64x1xi32>
    %21 = arith.cmpi slt, %19, %20 : vector<64x1xi32>
    %cst_10 = arith.constant 0xFF800000 : f32
    %22 = vector.broadcast %cst_10 : f32 to vector<64x1xf32>
    %23 = arith.select %21, %15, %22 : vector<64x1xi1>, vector<64x1xf32>
    %c0_11 = arith.constant 0 : index
    %c0_12 = arith.constant 0 : index
    %24 = vector.load %arg10[%c0_11, %c0_12] : memref<1x1xf32, #tpu.memory_space<vmem>>, vector<1x1xf32>
    %cst_13 = arith.constant dense<0xFF800000> : vector<1xf32>
    %25 = vector.multi_reduction <maximumf>, %23, %cst_13 [0] : vector<64x1xf32> to vector<1xf32>
    %26 = vector.shape_cast %25 : vector<1xf32> to vector<1x1xf32>
    %27 = arith.maximumf %24, %26 : vector<1x1xf32>
    %c0_14 = arith.constant 0 : index
    %c0_15 = arith.constant 0 : index
    %28 = vector.load %arg10[%c0_14, %c0_15] : memref<1x1xf32, #tpu.memory_space<vmem>>, vector<1x1xf32>
    %29 = arith.subf %28, %27 : vector<1x1xf32>
    %30 = math.exp %29 : vector<1x1xf32>
    %31 = vector.broadcast %27 : vector<1x1xf32> to vector<64x1xf32>
    %32 = arith.subf %23, %31 : vector<64x1xf32>
    %33 = math.exp %32 : vector<64x1xf32>
    %c0_16 = arith.constant 0 : index
    %c0_17 = arith.constant 0 : index
    %34 = vector.load %arg11[%c0_16, %c0_17] : memref<1x1xf32, #tpu.memory_space<vmem>>, vector<1x1xf32>
    %35 = arith.mulf %30, %34 : vector<1x1xf32>
    %cst_18 = arith.constant dense<0.000000e+00> : vector<1xf32>
    %36 = vector.multi_reduction <add>, %33, %cst_18 [0] : vector<64x1xf32> to vector<1xf32>
    %37 = vector.shape_cast %36 : vector<1xf32> to vector<1x1xf32>
    %38 = arith.addf %35, %37 : vector<1x1xf32>
    %c0_19 = arith.constant 0 : index
    %c0_20 = arith.constant 0 : index
    %39 = vector.load %arg11[%c0_19, %c0_20] : memref<1x1xf32, #tpu.memory_space<vmem>>, vector<1x1xf32>
    tpu.vector_store %arg11[%c0_19, %c0_20], %38 {strides = array<i32>} : memref<1x1xf32, #tpu.memory_space<vmem>>, vector<1x1xf32>,
    %c0_21 = arith.constant 0 : index
    %c0_22 = arith.constant 0 : index
    %40 = vector.load %arg9[%c0_21, %c0_22] : memref<1x256xf32, #tpu.memory_space<vmem>>, vector<1x256xf32>
    %41 = vector.broadcast %30 : vector<1x1xf32> to vector<1x256xf32>
    %42 = arith.mulf %41, %40 : vector<1x256xf32>
    %43 = arith.extf %4 : vector<64x256xbf16> to vector<64x256xf32>
    %44 = vector.broadcast %33 : vector<64x1xf32> to vector<64x256xf32>
    %45 = arith.mulf %44, %43 : vector<64x256xf32>
    %cst_23 = arith.constant dense<0.000000e+00> : vector<256xf32>
    %46 = vector.multi_reduction <add>, %45, %cst_23 [0] : vector<64x256xf32> to vector<256xf32>
    %47 = vector.shape_cast %46 : vector<256xf32> to vector<1x256xf32>
    %48 = arith.addf %42, %47 : vector<1x256xf32>
    %c0_24 = arith.constant 0 : index
    %c0_25 = arith.constant 0 : index
    %49 = vector.load %arg9[%c0_24, %c0_25] : memref<1x256xf32, #tpu.memory_space<vmem>>, vector<1x256xf32>
    tpu.vector_store %arg9[%c0_24, %c0_25], %48 {strides = array<i32>} : memref<1x256xf32, #tpu.memory_space<vmem>>, vector<1x256xf32>,
    %c0_26 = arith.constant 0 : index
    %c0_27 = arith.constant 0 : index
    %50 = vector.load %arg10[%c0_26, %c0_27] : memref<1x1xf32, #tpu.memory_space<vmem>>, vector<1x1xf32>
    tpu.vector_store %arg10[%c0_26, %c0_27], %27 {strides = array<i32>} : memref<1x1xf32, #tpu.memory_space<vmem>>, vector<1x1xf32>,
    %c3_i32 = arith.constant 3 : i32
    %51 = arith.cmpi eq, %arg1, %c3_i32 : i32
    %52 = arith.extui %51 : i1 to i32
    %c0_i32_28 = arith.constant 0 : i32
    %53 = arith.cmpi ne, %52, %c0_i32_28 : i32
    scf.if %53 {
      %c0_29 = arith.constant 0 : index
      %c0_30 = arith.constant 0 : index
      %54 = vector.load %arg9[%c0_29, %c0_30] : memref<1x256xf32, #tpu.memory_space<vmem>>, vector<1x256xf32>
      %c0_31 = arith.constant 0 : index
      %c0_32 = arith.constant 0 : index
      %55 = vector.load %arg11[%c0_31, %c0_32] : memref<1x1xf32, #tpu.memory_space<vmem>>, vector<1x1xf32>
      %56 = tpu.reciprocal %55 {approx = true} : vector<1x1xf32> -> vector<1x1xf32>
      %57 = vector.broadcast %56 : vector<1x1xf32> to vector<1x256xf32>
      %58 = arith.mulf %54, %57 : vector<1x256xf32>
      %59 = arith.truncf %58 : vector<1x256xf32> to vector<1x256xbf16>
      %c0_33 = arith.constant 0 : index
      %c0_34 = arith.constant 0 : index
      %60 = vector.load %arg6[%c0_33, %c0_34] : memref<256x128xbf16, #tpu.memory_space<vmem>>, vector<256x128xbf16>
      %cst_35 = arith.constant dense<0.000000e+00> : vector<1x128xf32>
      %61 = tpu.matmul %59, %60, %cst_35 {dimension_numbers = #tpu.dot_dimension_numbers<[1], [0], [0], [1], [0, 0, 1, 1], [], []>} : vector<1x256xbf16>, vector<256x128xbf16>, vector<1x128xf32> -> vector<1x128xf32>
      %c0_36 = arith.constant 0 : index
      %c0_37 = arith.constant 0 : index
      %62 = vector.load %arg7[%c0_36, %c0_37] : memref<1x128xf32, #tpu.memory_space<vmem>>, vector<1x128xf32>
      %63 = arith.addf %61, %62 : vector<1x128xf32>
      %c0_38 = arith.constant 0 : index
      %c0_39 = arith.constant 0 : index
      %c0_40 = arith.constant 0 : index
      %64 = vector.load %arg8[%c0_38, %c0_39, %c0_40] : memref<1x1x128xf32, #tpu.memory_space<vmem>>, vector<1x1x128xf32>
      %65 = vector.shape_cast %64 : vector<1x1x128xf32> to vector<1x128xf32>
      %66 = vector.shape_cast %63 : vector<1x128xf32> to vector<1x1x128xf32>
      tpu.vector_store %arg8[%c0_38, %c0_39, %c0_40], %66 {strides = array<i32>} : memref<1x1x128xf32, #tpu.memory_space<vmem>>, vector<1x1x128xf32>,
    } else {
    }
    return
  }
  func.func @transform_0(%arg0: i32, %arg1: i32) -> (i32, i32, i32) {
    %c0_i32 = arith.constant 0 : i32
    %c0_i32_0 = arith.constant 0 : i32
    return %arg0, %arg1, %c0_i32 : i32, i32, i32
  }
  func.func @transform_1(%arg0: i32, %arg1: i32) -> (i32, i32) {
    %c0_i32 = arith.constant 0 : i32
    %c0_i32_0 = arith.constant 0 : i32
    %c0_i32_1 = arith.constant 0 : i32
    return %c0_i32, %c0_i32_0 : i32, i32
  }
  func.func @transform_2(%arg0: i32, %arg1: i32) -> (i32, i32) {
    %c0_i32 = arith.constant 0 : i32
    %c0_i32_0 = arith.constant 0 : i32
    %c0_i32_1 = arith.constant 0 : i32
    return %c0_i32, %c0_i32_0 : i32, i32
  }
  func.func @transform_3(%arg0: i32, %arg1: i32) -> (i32, i32) {
    %c0_i32 = arith.constant 0 : i32
    %c0_i32_0 = arith.constant 0 : i32
    %c0_i32_1 = arith.constant 0 : i32
    return %c0_i32, %c0_i32_0 : i32, i32
  }
  func.func @transform_4(%arg0: i32, %arg1: i32) -> (i32, i32) {
    %c0_i32 = arith.constant 0 : i32
    %c0_i32_0 = arith.constant 0 : i32
    %c0_i32_1 = arith.constant 0 : i32
    return %c0_i32, %c0_i32_0 : i32, i32
  }
  func.func @transform_5(%arg0: i32, %arg1: i32) -> (i32, i32) {
    %c0_i32 = arith.constant 0 : i32
    %c0_i32_0 = arith.constant 0 : i32
    %c0_i32_1 = arith.constant 0 : i32
    return %c0_i32, %c0_i32_0 : i32, i32
  }
  func.func @transform_6(%arg0: i32, %arg1: i32) -> (i32, i32, i32) {
    %c0_i32 = arith.constant 0 : i32
    %c0_i32_0 = arith.constant 0 : i32
    %c0_i32_1 = arith.constant 0 : i32
    return %arg0, %c0_i32, %c0_i32_0 : i32, i32, i32
  }
}

</mosaic_0001>

<llo_original>
// kernel: tpu_custom_call.1
$region0: #{tpu_custom_call.1}
  #allocation0 [shape = 'u32[]', space=smem, size = 0x4, offset = 0x4, fixed_abs, tag = 'smem constant byte address 0x4 - core index']
  #allocation1 [shape = 'u32[144,128]{1,0:T(1,128)}', space=vmem, size = 0x12000, scoped, tag = 'internal scratch']
  #allocation2 [shape = 'f32[1,256]{1,0:T(1,128)}', space=vmem, size = 0x400, scoped, tag = 'scratch operand']
  #allocation3 [shape = 'f32[1,1]{1,0:T(1,128)}', space=vmem, size = 0x200, scoped, tag = 'scratch operand']
  #allocation4 [shape = 'f32[1,1]{1,0:T(1,128)}', space=vmem, size = 0x200, scoped, tag = 'scratch operand']
  %s0 = inlined_call_operand.hbm [shape: bf16[8,256,256], index: 0, kind: input, shape index: {}]
  %s1 = inlined_call_operand.hbm [shape: bf16[256,128], index: 1, kind: input, shape index: {}]
  %s2 = inlined_call_operand.vmem [shape: f32[1,128], index: 2, kind: input, shape index: {}]
  %s3 = inlined_call_operand.vmem [shape: f32[1,128], index: 3, kind: input, shape index: {}]
  %s4 = inlined_call_operand.hbm [shape: bf16[256,128], index: 4, kind: input, shape index: {}]
  %s5 = inlined_call_operand.vmem [shape: f32[1,128], index: 5, kind: input, shape index: {}]
  %s6 = inlined_call_operand.hbm [shape: f32[8,1,128], index: 6, kind: output, shape index: {}]
  %s7 = sld [smem:[#allocation0]]
  $region77: #{tpu_custom_call.1} parent=0
    _
  %s9 = ssub.s32 1, %s7
  %s10 = scalar_select 0, %s9, %s7
  $region1: #{tpu_custom_call.1} parent=0
    #allocation5 [shape = 'u8[65536]{0}', space=vmem, size = 0x10000, scoped, tag = 'input window, operand 0']
    #allocation6 [shape = 's32[2]{0}', space=sflag, size = 0x8, scoped, tag = 'scoped memory for tpu_custom_call.1']
    #allocation7 [shape = 's32[2]{0}', space=sflag, size = 0x8, scoped, tag = 'scoped memory for tpu_custom_call.1']
    #allocation8 [shape = 'u8[65536]{0}', space=vmem, size = 0x10000, scoped, tag = 'input window, operand 1, single buffered']
    #allocation9 [shape = 's32[1]{0}', space=sflag, size = 0x4, scoped, tag = 'scoped memory for tpu_custom_call.1']
    #allocation10 [shape = 'u8[65536]{0}', space=vmem, size = 0x10000, scoped, tag = 'input window, operand 4, single buffered']
    #allocation11 [shape = 'u8[1024]{0}', space=vmem, size = 0x400, scoped, tag = 'output window, operand 0']
    %11 = vsyncpa [#allocation6], 0
    %s12 = scalar_lea.sflag [#allocation6], 1
    %13 = vsyncpa %s12, 0
    %14 = vsyncpa [#allocation9], 0
    %15 = vsyncpa [#allocation7], 0
    %s16 = scalar_lea.sflag [#allocation7], 1
    %17 = vsyncpa %s16, 0
    loop: start=0, step=1, limit=34
    $region2: #{tpu_custom_call.1} parent=1 // loop_pre_header
      _
    $region3: #{tpu_custom_call.1} parent=1 // loop_header
      %s19 = sphi 0, %s23
      %p20 = scmp.ge.s32.totalorder %s19, 34
      %s26 = sphi 0, %s38
      %s27 = sphi 0, %s34
      %s28 = sphi 0, %s26
      %s29 = sphi 0, %s27
      %s30 = sphi 0, %s28
      %s31 = sphi 0, %s29
      %s43 = sphi 0, %s45
      %s46 = sphi 0, %s43
      %s47 = sphi 0, %s46
      %s63 = sphi 0, %s47
      %s67 = sphi 0, %s67
      %s69 = sphi 0, %s67
      %s70 = sphi 0, %s69
      %s84 = sphi 0, %s70
      %s88 = sphi 0, %s88
      %s90 = sphi 0, %s88
      %s91 = sphi 0, %s90
      %s105 = sphi 0, %s91
      %s109 = sphi 0, %s109
      %s111 = sphi 0, %s109
      %s112 = sphi 0, %s111
      %s126 = sphi 0, %s112
      %s130 = sphi 0, %s130
      %s132 = sphi 0, %s130
      %s133 = sphi 0, %s132
      %s147 = sphi 0, %s133
      %s151 = sphi 0, %s151
      %s153 = sphi 0, %s151
      %s154 = sphi 0, %s153
      %s168 = sphi 0, %s154
      %s174 = sphi 0, %s176
      %s177 = sphi 0, %s174
      %s178 = sphi 0, %s177
      %s194 = sphi 0, %s178
    $region4: #{tpu_custom_call.1} parent=1 // loop_header_branch
      %22 = sbr.rel (%p20) target = $region8
    $region5: #{tpu_custom_call.1} parent=1 // loop_body
      %s24 = ssub.s32 %s19, 1
      %s25 = ssub.s32 %s19, 2
      %s32 = sadd.s32 1, %s27
      %p33 = scmp.ge.s32.totalorder %s32, 4
      %s34 = scalar_select %p33, 0, %s32
      %s35 = sadd.s32 1, %s26
      %s36 = scalar_select %p33, %s35, %s26
      %p37 = scmp.ge.s32.totalorder %s36, 8
      %s38 = scalar_select %p37, 0, %s36
      %s39 = ssub.s32 %s26, %s38
      %s40 = ssub.s32 %s27, %s34
      %s41 = sor.u32 %s39, %s40
      %p42 = scmp.eq.s32.totalorder %s41, 0
      %s44 = sadd.s32 %s43, 1
      %s45 = scalar_select %p42, %s43, %s44
      %p48 = pneg %p42
      %p49 = scmp.eq.s32.totalorder %s19, 31
      %p50 = por %p48, %p49
      %p51 = scmp.ne.s32.totalorder %s43, %s46
      %p52 = scmp.eq.s32.totalorder %s19, 0
      %p53 = por %p51, %p52
      %p54 = scmp.ne.s32.totalorder %s43, %s46
      %p55 = scmp.eq.s32.totalorder %s24, 31
      %p56 = por %p54, %p55
      %p57 = scmp.ne.s32.totalorder %s46, %s47
      %p58 = scmp.eq.s32.totalorder %s24, 0
      %p59 = por %p57, %p58
      %p60 = scmp.ne.s32.totalorder %s46, %s47
      %p61 = scmp.eq.s32.totalorder %s25, 31
      %p62 = por %p60, %p61
      %p64 = scmp.ne.s32.totalorder %s47, %s63
      %p65 = scmp.eq.s32.totalorder %s25, 0
      %p66 = por %p64, %p65
      %s68 = sadd.s32 %s67, 1
      %p71 = scmp.eq.s32.totalorder %s19, 31
      %p72 = scmp.ne.s32.totalorder %s67, %s69
      %p73 = scmp.eq.s32.totalorder %s19, 0
      %p74 = por %p72, %p73
      %p75 = scmp.ne.s32.totalorder %s67, %s69
      %p76 = scmp.eq.s32.totalorder %s24, 31
      %p77 = por %p75, %p76
      %p78 = scmp.ne.s32.totalorder %s69, %s70
      %p79 = scmp.eq.s32.totalorder %s24, 0
      %p80 = por %p78, %p79
      %p81 = scmp.ne.s32.totalorder %s69, %s70
      %p82 = scmp.eq.s32.totalorder %s25, 31
      %p83 = por %p81, %p82
      %p85 = scmp.ne.s32.totalorder %s70, %s84
      %p86 = scmp.eq.s32.totalorder %s25, 0
      %p87 = por %p85, %p86
      %s89 = sadd.s32 %s88, 1
      %p92 = scmp.eq.s32.totalorder %s19, 31
      %p93 = scmp.ne.s32.totalorder %s88, %s90
      %p94 = scmp.eq.s32.totalorder %s19, 0
      %p95 = por %p93, %p94
      %p96 = scmp.ne.s32.totalorder %s88, %s90
      %p97 = scmp.eq.s32.totalorder %s24, 31
      %p98 = por %p96, %p97
      %p99 = scmp.ne.s32.totalorder %s90, %s91
      %p100 = scmp.eq.s32.totalorder %s24, 0
      %p101 = por %p99, %p100
      %p102 = scmp.ne.s32.totalorder %s90, %s91
      %p103 = scmp.eq.s32.totalorder %s25, 31
      %p104 = por %p102, %p103
      %p106 = scmp.ne.s32.totalorder %s91, %s105
      %p107 = scmp.eq.s32.totalorder %s25, 0
      %p108 = por %p106, %p107
      %s110 = sadd.s32 %s109, 1
      %p113 = scmp.eq.s32.totalorder %s19, 31
      %p114 = scmp.ne.s32.totalorder %s109, %s111
      %p115 = scmp.eq.s32.totalorder %s19, 0
      %p116 = por %p114, %p115
      %p117 = scmp.ne.s32.totalorder %s109, %s111
      %p118 = scmp.eq.s32.totalorder %s24, 31
      %p119 = por %p117, %p118
      %p120 = scmp.ne.s32.totalorder %s111, %s112
      %p121 = scmp.eq.s32.totalorder %s24, 0
      %p122 = por %p120, %p121
      %p123 = scmp.ne.s32.totalorder %s111, %s112
      %p124 = scmp.eq.s32.totalorder %s25, 31
      %p125 = por %p123, %p124
      %p127 = scmp.ne.s32.totalorder %s112, %s126
      %p128 = scmp.eq.s32.totalorder %s25, 0
      %p129 = por %p127, %p128
      %s131 = sadd.s32 %s130, 1
      %p134 = scmp.eq.s32.totalorder %s19, 31
      %p135 = scmp.ne.s32.totalorder %s130, %s132
      %p136 = scmp.eq.s32.totalorder %s19, 0
      %p137 = por %p135, %p136
      %p138 = scmp.ne.s32.totalorder %s130, %s132
      %p139 = scmp.eq.s32.totalorder %s24, 31
      %p140 = por %p138, %p139
      %p141 = scmp.ne.s32.totalorder %s132, %s133
      %p142 = scmp.eq.s32.totalorder %s24, 0
      %p143 = por %p141, %p142
      %p144 = scmp.ne.s32.totalorder %s132, %s133
      %p145 = scmp.eq.s32.totalorder %s25, 31
      %p146 = por %p144, %p145
      %p148 = scmp.ne.s32.totalorder %s133, %s147
      %p149 = scmp.eq.s32.totalorder %s25, 0
      %p150 = por %p148, %p149
      %s152 = sadd.s32 %s151, 1
      %p155 = scmp.eq.s32.totalorder %s19, 31
      %p156 = scmp.ne.s32.totalorder %s151, %s153
      %p157 = scmp.eq.s32.totalorder %s19, 0
      %p158 = por %p156, %p157
      %p159 = scmp.ne.s32.totalorder %s151, %s153
      %p160 = scmp.eq.s32.totalorder %s24, 31
      %p161 = por %p159, %p160
      %p162 = scmp.ne.s32.totalorder %s153, %s154
      %p163 = scmp.eq.s32.totalorder %s24, 0
      %p164 = por %p162, %p163
      %p165 = scmp.ne.s32.totalorder %s153, %s154
      %p166 = scmp.eq.s32.totalorder %s25, 31
      %p167 = por %p165, %p166
      %p169 = scmp.ne.s32.totalorder %s154, %s168
      %p170 = scmp.eq.s32.totalorder %s25, 0
      %p171 = por %p169, %p170
      %s172 = ssub.s32 %s26, %s38
      %p173 = scmp.eq.s32.totalorder %s172, 0
      %s175 = sadd.s32 %s174, 1
      %s176 = scalar_select %p173, %s174, %s175
      %p179 = pneg %p173
      %p180 = scmp.eq.s32.totalorder %s19, 31
      %p181 = por %p179, %p180
      %p182 = scmp.ne.s32.totalorder %s174, %s177
      %p183 = scmp.eq.s32.totalorder %s19, 0
      %p184 = por %p182, %p183
      %p185 = scmp.ne.s32.totalorder %s174, %s177
      %p186 = scmp.eq.s32.totalorder %s24, 31
      %p187 = por %p185, %p186
      %p188 = scmp.ne.s32.totalorder %s177, %s178
      %p189 = scmp.eq.s32.totalorder %s24, 0
      %p190 = por %p188, %p189
      %p191 = scmp.ne.s32.totalorder %s177, %s178
      %p192 = scmp.eq.s32.totalorder %s25, 31
      %p193 = por %p191, %p192
      %p195 = scmp.ne.s32.totalorder %s178, %s194
      %p196 = scmp.eq.s32.totalorder %s25, 0
      %p197 = por %p195, %p196
      %p198 = scmp.le.s32.totalorder 1, %s19
      %p199 = scmp.lt.s32.totalorder %s19, 33
      %p200 = pnand %p198, %p199
      %p201 = pneg %p200
      // Predicated region
      $region9: #{tpu_custom_call.1} parent=5 // pred_check
        _
      $region10: #{tpu_custom_call.1} parent=5 // pred_check_branch
        %203 = sbr.rel (%p200) target = $region12
      $region11: #{tpu_custom_call.1} parent=5 // pred_region
        %s204 = ssub.s32 %s19, 1
        // Predicated region
        $region13: #{tpu_custom_call.1} parent=11 // pred_check
          %p205 = pneg %p80
        $region14: #{tpu_custom_call.1} parent=11 // pred_check_branch
          %207 = sbr.rel (%p205) target = $region16
        $region15: #{tpu_custom_call.1} parent=11 // pred_region
          %s209 = ssub.s32 2048, 2048
          %210 = vsyncadd [#allocation9], %s209
          %s211 = sshll.u32 [#allocation8], 4
          %s212 = int_to_ptr.vmem [resolvable:$true] %s211
          %217 = dma.hbm_to_vmem [thread:$0]  %s1, 2048, %s212, [#allocation9], 64, 64, 4
        $region16: #{tpu_custom_call.1} parent=11 // pred_fallthru
          _
        // Predicated region
        $region17: #{tpu_custom_call.1} parent=11 // pred_check
          %p218 = pneg %p101
        $region18: #{tpu_custom_call.1} parent=11 // pred_check_branch
          %220 = sbr.rel (%p218) target = $region20
        $region19: #{tpu_custom_call.1} parent=11 // pred_region
          _
        $region20: #{tpu_custom_call.1} parent=11 // pred_fallthru
          _
        // Predicated region
        $region21: #{tpu_custom_call.1} parent=11 // pred_check
          %p221 = pneg %p122
        $region22: #{tpu_custom_call.1} parent=11 // pred_check_branch
          %223 = sbr.rel (%p221) target = $region24
        $region23: #{tpu_custom_call.1} parent=11 // pred_region
          _
        $region24: #{tpu_custom_call.1} parent=11 // pred_fallthru
          _
        // Predicated region
        $region25: #{tpu_custom_call.1} parent=11 // pred_check
          %p224 = pneg %p143
        $region26: #{tpu_custom_call.1} parent=11 // pred_check_branch
          %226 = sbr.rel (%p224) target = $region28
        $region27: #{tpu_custom_call.1} parent=11 // pred_region
          %s228 = ssub.s32 2048, 2048
          %229 = vsyncadd [#allocation9], %s228
          %s230 = sshll.u32 [#allocation10], 4
          %s231 = int_to_ptr.vmem [resolvable:$true] %s230
          %236 = dma.hbm_to_vmem [thread:$0]  %s4, 2048, %s231, [#allocation9], 64, 64, 4
        $region28: #{tpu_custom_call.1} parent=11 // pred_fallthru
          _
        // Predicated region
        $region29: #{tpu_custom_call.1} parent=11 // pred_check
          %p237 = pneg %p164
        $region30: #{tpu_custom_call.1} parent=11 // pred_check_branch
          %239 = sbr.rel (%p237) target = $region32
        $region31: #{tpu_custom_call.1} parent=11 // pred_region
          _
        $region32: #{tpu_custom_call.1} parent=11 // pred_fallthru
          _
      $region12: #{tpu_custom_call.1} parent=5 // pred_fallthru
        _
      %p240 = scmp.lt.s32.totalorder %s19, 32
      // Predicated region
      $region33: #{tpu_custom_call.1} parent=5 // pred_check
        %p241 = pneg %p240
      $region34: #{tpu_custom_call.1} parent=5 // pred_check_branch
        %243 = sbr.rel (%p241) target = $region36
      $region35: #{tpu_custom_call.1} parent=5 // pred_region
        // Predicated region
        $region37: #{tpu_custom_call.1} parent=35 // pred_check
          %p244 = pneg %p53
        $region38: #{tpu_custom_call.1} parent=35 // pred_check_branch
          %246 = sbr.rel (%p244) target = $region40
        $region39: #{tpu_custom_call.1} parent=35 // pred_region
          %s247 = sand.u32 %s43, 1
          %s248 = scalar_lea.sflag [#allocation6], %s247
          %s249 = sand.u32 %s43, 1
          %s250 = smul.addr %s249, 64
          %s251 = scalar_lea.vmem [#allocation5], %s250
          %s252 = smul.u32 8, %s27
          %s254 = ssub.s32 1024, 1024
          %255 = vsyncadd %s248, %s254
          %s256 = smul.addr %s252, 2
          %s257 = smul.addr %s26, 64
          %s258 = sadd.s32 %s256, %s257
          %s259 = smul.addr %s258, 64
          %s260 = scalar_lea.hbm %s0, %s259
          %s261 = sshll.u32 %s251, 4
          %s262 = int_to_ptr.vmem [resolvable:$true] %s261
          %267 = dma.hbm_to_vmem [thread:$0]  %s260, 1024, %s262, %s248, 128, 128, 8
        $region40: #{tpu_custom_call.1} parent=35 // pred_fallthru
          _
      $region36: #{tpu_custom_call.1} parent=5 // pred_fallthru
        _
      %p268 = scmp.le.s32.totalorder 1, %s19
      %p269 = scmp.lt.s32.totalorder %s19, 33
      %p270 = pnand %p268, %p269
      %p271 = pneg %p270
      // Predicated region
      $region41: #{tpu_custom_call.1} parent=5 // pred_check
        _
      $region42: #{tpu_custom_call.1} parent=5 // pred_check_branch
        %273 = sbr.rel (%p270) target = $region44
      $region43: #{tpu_custom_call.1} parent=5 // pred_region
        %s274 = ssub.s32 %s19, 1
        %s275 = sand.u32 %s46, 1
        %s276 = scalar_lea.sflag [#allocation6], %s275
        %s277 = sand.u32 %s46, 1
        %s278 = smul.addr %s277, 64
        %s279 = scalar_lea.vmem [#allocation5], %s278
        // Predicated region
        $region45: #{tpu_custom_call.1} parent=43 // pred_check
          %p280 = pneg %p59
        $region46: #{tpu_custom_call.1} parent=43 // pred_check_branch
          %282 = sbr.rel (%p280) target = $region48
        $region47: #{tpu_custom_call.1} parent=43 // pred_region
          %283 = dma.done %s276, 1024
        $region48: #{tpu_custom_call.1} parent=43 // pred_fallthru
          _
        // Predicated region
        $region49: #{tpu_custom_call.1} parent=43 // pred_check
          %p284 = pneg %p80
        $region50: #{tpu_custom_call.1} parent=43 // pred_check_branch
          %286 = sbr.rel (%p284) target = $region52
        $region51: #{tpu_custom_call.1} parent=43 // pred_region
          %287 = dma.done [#allocation9], 2048
        $region52: #{tpu_custom_call.1} parent=43 // pred_fallthru
          _
        // Predicated region
        $region53: #{tpu_custom_call.1} parent=43 // pred_check
          %p288 = pneg %p143
        $region54: #{tpu_custom_call.1} parent=43 // pred_check_branch
          %290 = sbr.rel (%p288) target = $region56
        $region55: #{tpu_custom_call.1} parent=43 // pred_region
          %291 = dma.done [#allocation9], 2048
        $region56: #{tpu_custom_call.1} parent=43 // pred_fallthru
          _
        %s292 = sand.u32 %s46, 1
        %s293 = scalar_lea.sflag [#allocation6], %s292
        %s294 = sand.u32 %s46, 1
        %s295 = smul.addr %s294, 64
        %s296 = scalar_lea.vmem [#allocation5], %s295
        %p297 = pneg %p59
        %p298 = pneg %p56
        %p299 = pneg %p80
        %p300 = pneg %p77
        %p301 = pneg %p101
        %p302 = pneg %p98
        %p303 = pneg %p122
        %p304 = pneg %p119
        %p305 = pneg %p143
        %p306 = pneg %p140
        %p307 = pneg %p164
        %p308 = pneg %p161
        %p309 = pneg %p190
        %p310 = pneg %p187
        %s311 = sand.u32 %s177, 1
        %s312 = scalar_lea.sflag [#allocation7], %s311
        %s313 = sand.u32 %s177, 1
        %s314 = scalar_lea.vmem [#allocation11], %s313
        %s315 = smul.u32 8, %s29
        %p317 = scmp.eq.s32.totalorder %s29, 0
        // Predicated region
        $region57: #{tpu_custom_call.1} parent=43 // pred_check
          %p318 = pneg %p317
        $region58: #{tpu_custom_call.1} parent=43 // pred_check_branch
          %320 = sbr.rel (%p318) target = $region60
        $region59: #{tpu_custom_call.1} parent=43 // pred_region
          %vm321 = vcmask 0
          %322 = vst.msk [vmem:[#allocation3] sm:$0x1] %vm321, -inf
          %323 = vst.msk [vmem:[#allocation4] sm:$0x1] %vm321, 0.0
          %v324 = vlaneseq
          %vm325 = vcmp.ge.s32.totalorder %v324, 0
          %vm326 = vcmp.lt.s32.totalorder %v324, 256
          %vm327 = vmand %vm325, %vm326
          %328 = vst.msk [vmem:[#allocation2] sm:$0x3] %vm327, 0.0
        $region60: #{tpu_custom_call.1} parent=43 // pred_fallthru
          _
        %v329 = vld [vmem:[%s279] sm:$0xff]
        %v330 = vld [vmem:[%s279 + $0x8] sm:$0xff]
        %v331 = vld [vmem:[%s279 + $0x10] sm:$0xff]
        %v332 = vld [vmem:[%s279 + $0x18] sm:$0xff]
        %v333 = vld [vmem:[%s279 + $0x20] sm:$0xff]
        %v334 = vld [vmem:[%s279 + $0x28] sm:$0xff]
        %v335 = vld [vmem:[%s279 + $0x30] sm:$0xff]
        %v336 = vld [vmem:[%s279 + $0x38] sm:$0xff]
        %v337 = vld [vmem:[#allocation8] sm:$0xf]
        %v338 = vld [vmem:[#allocation8 + $0x4] sm:$0xf]
        %v339 = vld [vmem:[#allocation8 + $0x8] sm:$0xf]
        %v340 = vld [vmem:[#allocation8 + $0xc] sm:$0xf]
        %v341 = vld [vmem:[#allocation8 + $0x10] sm:$0xf]
        %v342 = vld [vmem:[#allocation8 + $0x14] sm:$0xf]
        %v343 = vld [vmem:[#allocation8 + $0x18] sm:$0xf]
        %v344 = vld [vmem:[#allocation8 + $0x1c] sm:$0xf]
        %v345 = vld [vmem:[#allocation8 + $0x20] sm:$0xf]
        %v346 = vld [vmem:[#allocation8 + $0x24] sm:$0xf]
        %v347 = vld [vmem:[#allocation8 + $0x28] sm:$0xf]
        %v348 = vld [vmem:[#allocation8 + $0x2c] sm:$0xf]
        %v349 = vld [vmem:[#allocation8 + $0x30] sm:$0xf]
        %v350 = vld [vmem:[#allocation8 + $0x34] sm:$0xf]
        %v351 = vld [vmem:[#allocation8 + $0x38] sm:$0xf]
        %v352 = vld [vmem:[#allocation8 + $0x3c] sm:$0xf]
        %v353 = vld [vmem:[#allocation8 + $0x40] sm:$0xf]
        %v354 = vld [vmem:[#allocation8 + $0x44] sm:$0xf]
        %v355 = vld [vmem:[#allocation8 + $0x48] sm:$0xf]
        %v356 = vld [vmem:[#allocation8 + $0x4c] sm:$0xf]
        %v357 = vld [vmem:[#allocation8 + $0x50] sm:$0xf]
        %v358 = vld [vmem:[#allocation8 + $0x54] sm:$0xf]
        %v359 = vld [vmem:[#allocation8 + $0x58] sm:$0xf]
        %v360 = vld [vmem:[#allocation8 + $0x5c] sm:$0xf]
        %v361 = vld [vmem:[#allocation8 + $0x60] sm:$0xf]
        %v362 = vld [vmem:[#allocation8 + $0x64] sm:$0xf]
        %v363 = vld [vmem:[#allocation8 + $0x68] sm:$0xf]
        %v364 = vld [vmem:[#allocation8 + $0x6c] sm:$0xf]
        %v365 = vld [vmem:[#allocation8 + $0x70] sm:$0xf]
        %v366 = vld [vmem:[#allocation8 + $0x74] sm:$0xf]
        %v367 = vld [vmem:[#allocation8 + $0x78] sm:$0xf]
        %v368 = vld [vmem:[#allocation8 + $0x7c] sm:$0xf]
        %v369 = vld [vmem:[%s2] sm:$0x1]
        %v371 = vlaneseq
        %v372 = vshrl.u32 %v371, 7
        %v373 = vsub.s32 0, %v372
        %v374 = vrot.slane %v369, %v373
        %v384 = vunpack.c.l.b16 %v329
        %v385 = vunpack.c.h.b16 %v329
        %v386 = vunpack.c.l.b16 %v330
        %v387 = vunpack.c.h.b16 %v330
        %v388 = vunpack.c.l.b16 %v331
        %v389 = vunpack.c.h.b16 %v331
        %v390 = vunpack.c.l.b16 %v332
        %v391 = vunpack.c.h.b16 %v332
        %v392 = vunpack.c.l.b16 %v333
        %v393 = vunpack.c.h.b16 %v333
        %v394 = vunpack.c.l.b16 %v334
        %v395 = vunpack.c.h.b16 %v334
        %v396 = vunpack.c.l.b16 %v335
        %v397 = vunpack.c.h.b16 %v335
        %v398 = vunpack.c.l.b16 %v336
        %v399 = vunpack.c.h.b16 %v336
        %v400 = vpack.c.b16 %v386, %v384
        %v401 = vpack.c.b16 %v387, %v385
        %v402 = vpack.c.b16 %v390, %v388
        %v403 = vpack.c.b16 %v391, %v389
        %v404 = vpack.c.b16 %v394, %v392
        %v405 = vpack.c.b16 %v395, %v393
        %v406 = vpack.c.b16 %v398, %v396
        %v407 = vpack.c.b16 %v399, %v397
        %v448 = vunpack.c.l.b16 %v337
        %v449 = vunpack.c.l.b16 %v338
        %v450 = vunpack.c.l.b16 %v339
        %v451 = vunpack.c.l.b16 %v340
        %v452 = vunpack.c.l.b16 %v341
        %v453 = vunpack.c.l.b16 %v342
        %v454 = vunpack.c.l.b16 %v343
        %v455 = vunpack.c.l.b16 %v344
        %v456 = vunpack.c.l.b16 %v345
        %v457 = vunpack.c.l.b16 %v346
        %v458 = vunpack.c.l.b16 %v347
        %v459 = vunpack.c.l.b16 %v348
        %v460 = vunpack.c.l.b16 %v349
        %v461 = vunpack.c.l.b16 %v350
        %v462 = vunpack.c.l.b16 %v351
        %v463 = vunpack.c.l.b16 %v352
        %v464 = vunpack.c.l.b16 %v353
        %v465 = vunpack.c.l.b16 %v354
        %v466 = vunpack.c.l.b16 %v355
        %v467 = vunpack.c.l.b16 %v356
        %v468 = vunpack.c.l.b16 %v357
        %v469 = vunpack.c.l.b16 %v358
        %v470 = vunpack.c.l.b16 %v359
        %v471 = vunpack.c.l.b16 %v360
        %v472 = vunpack.c.l.b16 %v361
        %v473 = vunpack.c.l.b16 %v362
        %v474 = vunpack.c.l.b16 %v363
        %v475 = vunpack.c.l.b16 %v364
        %v476 = vunpack.c.l.b16 %v365
        %v477 = vunpack.c.l.b16 %v366
        %v478 = vunpack.c.l.b16 %v367
        %v479 = vunpack.c.l.b16 %v368
        %v480 = vpack.c.b16 %v449, %v448
        %v481 = vpack.c.b16 %v451, %v450
        %v482 = vpack.c.b16 %v453, %v452
        %v483 = vpack.c.b16 %v455, %v454
        %v484 = vpack.c.b16 %v457, %v456
        %v485 = vpack.c.b16 %v459, %v458
        %v486 = vpack.c.b16 %v461, %v460
        %v487 = vpack.c.b16 %v463, %v462
        %v488 = vpack.c.b16 %v465, %v464
        %v489 = vpack.c.b16 %v467, %v466
        %v490 = vpack.c.b16 %v469, %v468
        %v491 = vpack.c.b16 %v471, %v470
        %v492 = vpack.c.b16 %v473, %v472
        %v493 = vpack.c.b16 %v475, %v474
        %v494 = vpack.c.b16 %v477, %v476
        %v495 = vpack.c.b16 %v479, %v478
        %512 = vmatprep.subr.bf16.mxu0 0
        %513 = vmatpush1.bf16.msra.mxu0 %v480
        %514 = vmatprep.subr.bf16.mxu0 0
        %515 = vmatpush1.bf16.msra.mxu0 %v481
        %516 = vmatprep.subr.bf16.mxu0 0
        %517 = vmatpush1.bf16.msra.mxu0 %v482
        %518 = vmatprep.subr.bf16.mxu0 0
        %519 = vmatpush1.bf16.msra.mxu0 %v483
        %520 = vmatprep.subr.bf16.mxu0 0
        %521 = vmatpush1.bf16.msra.mxu0 %v484
        %522 = vmatprep.subr.bf16.mxu0 0
        %523 = vmatpush1.bf16.msra.mxu0 %v485
        %524 = vmatprep.subr.bf16.mxu0 0
        %525 = vmatpush1.bf16.msra.mxu0 %v486
        %526 = vmatprep.subr.bf16.mxu0 0
        %527 = vmatpush1.bf16.msra.mxu0 %v487
        %528 = vmatprep.subr.bf16.mxu0 0
        %529 = vmatpush1.bf16.msra.mxu0 %v488
        %530 = vmatprep.subr.bf16.mxu0 0
        %531 = vmatpush1.bf16.msra.mxu0 %v489
        %532 = vmatprep.subr.bf16.mxu0 0
        %533 = vmatpush1.bf16.msra.mxu0 %v490
        %534 = vmatprep.subr.bf16.mxu0 0
        %535 = vmatpush1.bf16.msra.mxu0 %v491
        %536 = vmatprep.subr.bf16.mxu0 0
        %537 = vmatpush1.bf16.msra.mxu0 %v492
        %538 = vmatprep.subr.bf16.mxu0 0
        %539 = vmatpush1.bf16.msra.mxu0 %v493
        %540 = vmatprep.subr.bf16.mxu0 0
        %541 = vmatpush1.bf16.msra.mxu0 %v494
        %542 = vmatprep.subr.bf16.mxu0 0
        %543 = vmatpush1.bf16.msra.mxu0 %v495
        %544 = vmatprep.mubr.bf16.mxu0 %v401
        %545 = vmatmul.mubr.bf16.gmra.mrb[0].mxu0 %v400
        %v546 = vpop.f32.mrb[0].mxu0
        %v547 = vadd.f32 %v374, %v546
        %v548 = vpop.f32.mrb[0].mxu0
        %v549 = vpop.f32.mrb[0].mxu0
        %v550 = vadd.f32 %v374, %v549
        %v551 = vpop.f32.mrb[0].mxu0
        %552 = vmatprep.mubr.bf16.mxu0 %v403
        %553 = vmatmul.mubr.bf16.gmra.mrb[0].mxu0 %v402
        %v554 = vpop.f32.mrb[0].mxu0
        %v555 = vadd.f32 %v374, %v554
        %v556 = vpop.f32.mrb[0].mxu0
        %v557 = vpop.f32.mrb[0].mxu0
        %v558 = vadd.f32 %v374, %v557
        %v559 = vpop.f32.mrb[0].mxu0
        %560 = vmatprep.mubr.bf16.mxu0 %v405
        %561 = vmatmul.mubr.bf16.gmra.mrb[0].mxu0 %v404
        %v562 = vpop.f32.mrb[0].mxu0
        %v563 = vadd.f32 %v374, %v562
        %v564 = vpop.f32.mrb[0].mxu0
        %v565 = vpop.f32.mrb[0].mxu0
        %v566 = vadd.f32 %v374, %v565
        %v567 = vpop.f32.mrb[0].mxu0
        %568 = vmatprep.mubr.bf16.mxu0 %v407
        %569 = vmatmul.mubr.bf16.gmra.mrb[0].mxu0 %v406
        %v570 = vpop.f32.mrb[0].mxu0
        %v571 = vadd.f32 %v374, %v570
        %v572 = vpop.f32.mrb[0].mxu0
        %v573 = vpop.f32.mrb[0].mxu0
        %v574 = vadd.f32 %v374, %v573
        %v575 = vpop.f32.mrb[0].mxu0
        %576 = vdwg.mxu0
        %v577 = vtanh.pop %v547
        %v578 = vtanh.pop %v550
        %v579 = vtanh.pop %v555
        %v580 = vtanh.pop %v558
        %v581 = vtanh.pop %v563
        %v582 = vtanh.pop %v566
        %v583 = vtanh.pop %v571
        %v584 = vtanh.pop %v574
        %v585 = vld [vmem:[%s3] sm:$0x1]
        %v587 = vlaneseq
        %v588 = vshrl.u32 %v587, 7
        %v589 = vsub.s32 0, %v588
        %v590 = vrot.slane %v585, %v589
        %v592 = vmul.f32 %v577, %v590
        %v593 = vmul.f32 %v578, %v590
        %v594 = vmul.f32 %v579, %v590
        %v595 = vmul.f32 %v580, %v590
        %v596 = vmul.f32 %v581, %v590
        %v597 = vmul.f32 %v582, %v590
        %v598 = vmul.f32 %v583, %v590
        %v599 = vmul.f32 %v584, %v590
        %600 = vadd.xlane.f32.xlu0 %v592
        %v601 = vpop.xlane.xlu0 %600
        %602 = vadd.xlane.f32.xlu0 %v593
        %v603 = vpop.xlane.xlu0 %602
        %604 = vadd.xlane.f32.xlu0 %v594
        %v605 = vpop.xlane.xlu0 %604
        %606 = vadd.xlane.f32.xlu0 %v595
        %v607 = vpop.xlane.xlu0 %606
        %608 = vadd.xlane.f32.xlu0 %v596
        %v609 = vpop.xlane.xlu0 %608
        %610 = vadd.xlane.f32.xlu0 %v597
        %v611 = vpop.xlane.xlu0 %610
        %612 = vadd.xlane.f32.xlu0 %v598
        %v613 = vpop.xlane.xlu0 %612
        %614 = vadd.xlane.f32.xlu0 %v599
        %v615 = vpop.xlane.xlu0 %614
        %s616 = smul.u32 %s29, 64
        %v617 = vlaneseq
        %v618 = vshrl.u32 %v617, 7
        %v619 = vadd.s32 %v618, 8
        %v620 = vadd.s32 %v618, 16
        %v621 = vadd.s32 %v618, 24
        %v622 = vadd.s32 %v618, 32
        %v623 = vadd.s32 %v618, 40
        %v624 = vadd.s32 %v618, 48
        %v625 = vadd.s32 %v618, 56
        %v626 = vstv %s616
        %v627 = vadd.s32 %v626, %v618
        %v628 = vadd.s32 %v626, %v619
        %v629 = vadd.s32 %v626, %v620
        %v630 = vadd.s32 %v626, %v621
        %v631 = vadd.s32 %v626, %v622
        %v632 = vadd.s32 %v626, %v623
        %v633 = vadd.s32 %v626, %v624
        %v634 = vadd.s32 %v626, %v625
        %vm635 = vcmp.lt.s32.totalorder %v627, 200
        %vm636 = vcmp.lt.s32.totalorder %v628, 200
        %vm637 = vcmp.lt.s32.totalorder %v629, 200
        %vm638 = vcmp.lt.s32.totalorder %v630, 200
        %vm639 = vcmp.lt.s32.totalorder %v631, 200
        %vm640 = vcmp.lt.s32.totalorder %v632, 200
        %vm641 = vcmp.lt.s32.totalorder %v633, 200
        %vm642 = vcmp.lt.s32.totalorder %v634, 200
        %v643 = vsel %vm635, %v601, -inf
        %v644 = vsel %vm636, %v603, -inf
        %v645 = vsel %vm637, %v605, -inf
        %v646 = vsel %vm638, %v607, -inf
        %v647 = vsel %vm639, %v609, -inf
        %v648 = vsel %vm640, %v611, -inf
        %v649 = vsel %vm641, %v613, -inf
        %v650 = vsel %vm642, %v615, -inf
        %v651 = vld [vmem:[#allocation3] sm:$0x1]
        %v652 = vmax.f32 %v643, %v647
        %v653 = vmax.f32 %v644, %v648
        %v654 = vmax.f32 %v645, %v649
        %v655 = vmax.f32 %v646, %v650
        %v656 = vmax.f32 %v652, %v653
        %v657 = vmax.f32 %v654, %v655
        %v658 = vmax.f32 %v656, %v657
        %v659 = vrot.slane %v658, 4
        %v660 = vmax.f32 %v658, %v659
        %v661 = vrot.slane %v660, 2
        %v662 = vmax.f32 %v660, %v661
        %v663 = vrot.slane %v662, 1
        %v664 = vmax.f32 %v662, %v663
        %v665 = vmax.f32 %v651, %v664
        %v666 = vsub.f32 %v651, %v665
        %v667 = vmul.f32 %v666, 1.442695
        %v668 = vpow.pop %v667
        %v670 = vlaneseq
        %v671 = vshrl.u32 %v670, 7
        %v672 = vsub.s32 0, %v671
        %v673 = vrot.slane %v665, %v672
        %v675 = vsub.f32 %v643, %v673
        %v676 = vsub.f32 %v644, %v673
        %v677 = vsub.f32 %v645, %v673
        %v678 = vsub.f32 %v646, %v673
        %v679 = vsub.f32 %v647, %v673
        %v680 = vsub.f32 %v648, %v673
        %v681 = vsub.f32 %v649, %v673
        %v682 = vsub.f32 %v650, %v673
        %v683 = vmul.f32 %v675, 1.442695
        %v684 = vpow.pop %v683
        %v685 = vmul.f32 %v676, 1.442695
        %v686 = vpow.pop %v685
        %v687 = vmul.f32 %v677, 1.442695
        %v688 = vpow.pop %v687
        %v689 = vmul.f32 %v678, 1.442695
        %v690 = vpow.pop %v689
        %v691 = vmul.f32 %v679, 1.442695
        %v692 = vpow.pop %v691
        %v693 = vmul.f32 %v680, 1.442695
        %v694 = vpow.pop %v693
        %v695 = vmul.f32 %v681, 1.442695
        %v696 = vpow.pop %v695
        %v697 = vmul.f32 %v682, 1.442695
        %v698 = vpow.pop %v697
        %v699 = vld [vmem:[#allocation4] sm:$0x1]
        %v700 = vmul.f32 %v668, %v699
        %vm701 = vcmask 7168
        %v702 = vsel %vm701, %v684, 0.0
        %v703 = vsel %vm701, %v686, 0.0
        %v704 = vadd.f32 %v702, %v703
        %v705 = vsel %vm701, %v688, 0.0
        %v706 = vadd.f32 %v704, %v705
        %v707 = vsel %vm701, %v690, 0.0
        %v708 = vadd.f32 %v706, %v707
        %v709 = vsel %vm701, %v692, 0.0
        %v710 = vadd.f32 %v708, %v709
        %v711 = vsel %vm701, %v694, 0.0
        %v712 = vadd.f32 %v710, %v711
        %v713 = vsel %vm701, %v696, 0.0
        %v714 = vadd.f32 %v712, %v713
        %v715 = vsel %vm701, %v698, 0.0
        %v716 = vadd.f32 %v714, %v715
        %v717 = vrot.slane %v716, 4
        %v718 = vadd.f32 %v716, %v717
        %v719 = vrot.slane %v718, 2
        %v720 = vadd.f32 %v718, %v719
        %v721 = vrot.slane %v720, 1
        %v722 = vadd.f32 %v720, %v721
        %v723 = vadd.f32 %v700, %v722
        %vm724 = vcmask 0
        %725 = vst.msk [vmem:[#allocation4] sm:$0x1] %vm724, %v723
        %v726 = vld [vmem:[#allocation2] sm:$0x3]
        %728 = vset.pattern.permute.xlu0 0
        %729 = vperm.xlu0 %728, %v668
        %v730 = vpop.permute.xlu0 %729
        %v732 = vlaneseq
        %v733 = vshrl.u32 %v732, 7
        %v734 = vsub.s32 0, %v733
        %v735 = vrot.slane %v730, %v734
        %v736 = vmul.f32 %v735, %v726
        %v737 = vunpack.c.l.bf16 %v329
        %v738 = vunpack.c.h.bf16 %v329
        %v739 = vunpack.c.l.bf16 %v330
        %v740 = vunpack.c.h.bf16 %v330
        %v741 = vunpack.c.l.bf16 %v331
        %v742 = vunpack.c.h.bf16 %v331
        %v743 = vunpack.c.l.bf16 %v332
        %v744 = vunpack.c.h.bf16 %v332
        %v745 = vunpack.c.l.bf16 %v333
        %v746 = vunpack.c.h.bf16 %v333
        %v747 = vunpack.c.l.bf16 %v334
        %v748 = vunpack.c.h.bf16 %v334
        %v749 = vunpack.c.l.bf16 %v335
        %v750 = vunpack.c.h.bf16 %v335
        %v751 = vunpack.c.l.bf16 %v336
        %v752 = vunpack.c.h.bf16 %v336
        %754 = vset.pattern.permute.xlu0 0
        %755 = vperm.xlu0 %754, %v684
        %v756 = vpop.permute.xlu0 %755
        %759 = vset.pattern.permute.xlu0 0
        %760 = vperm.xlu0 %759, %v686
        %v761 = vpop.permute.xlu0 %760
        %764 = vset.pattern.permute.xlu0 0
        %765 = vperm.xlu0 %764, %v688
        %v766 = vpop.permute.xlu0 %765
        %769 = vset.pattern.permute.xlu0 0
        %770 = vperm.xlu0 %769, %v690
        %v771 = vpop.permute.xlu0 %770
        %774 = vset.pattern.permute.xlu0 0
        %775 = vperm.xlu0 %774, %v692
        %v776 = vpop.permute.xlu0 %775
        %779 = vset.pattern.permute.xlu0 0
        %780 = vperm.xlu0 %779, %v694
        %v781 = vpop.permute.xlu0 %780
        %784 = vset.pattern.permute.xlu0 0
        %785 = vperm.xlu0 %784, %v696
        %v786 = vpop.permute.xlu0 %785
        %789 = vset.pattern.permute.xlu0 0
        %790 = vperm.xlu0 %789, %v698
        %v791 = vpop.permute.xlu0 %790
        %v793 = vmul.f32 %v756, %v737
        %v794 = vmul.f32 %v756, %v738
        %v795 = vmul.f32 %v761, %v739
        %v796 = vmul.f32 %v761, %v740
        %v797 = vmul.f32 %v766, %v741
        %v798 = vmul.f32 %v766, %v742
        %v799 = vmul.f32 %v771, %v743
        %v800 = vmul.f32 %v771, %v744
        %v801 = vmul.f32 %v776, %v745
        %v802 = vmul.f32 %v776, %v746
        %v803 = vmul.f32 %v781, %v747
        %v804 = vmul.f32 %v781, %v748
        %v805 = vmul.f32 %v786, %v749
        %v806 = vmul.f32 %v786, %v750
        %v807 = vmul.f32 %v791, %v751
        %v808 = vmul.f32 %v791, %v752
        %v809 = vadd.f32 %v793, %v795
        %v810 = vadd.f32 %v809, %v797
        %v811 = vadd.f32 %v810, %v799
        %v812 = vadd.f32 %v811, %v801
        %v813 = vadd.f32 %v812, %v803
        %v814 = vadd.f32 %v813, %v805
        %v815 = vadd.f32 %v814, %v807
        %v816 = vrot.slane %v815, 4
        %v817 = vadd.f32 %v815, %v816
        %v818 = vrot.slane %v817, 2
        %v819 = vadd.f32 %v817, %v818
        %v820 = vrot.slane %v819, 1
        %v821 = vadd.f32 %v819, %v820
        %v822 = vadd.f32 %v794, %v796
        %v823 = vadd.f32 %v822, %v798
        %v824 = vadd.f32 %v823, %v800
        %v825 = vadd.f32 %v824, %v802
        %v826 = vadd.f32 %v825, %v804
        %v827 = vadd.f32 %v826, %v806
        %v828 = vadd.f32 %v827, %v808
        %v829 = vrot.slane %v828, 4
        %v830 = vadd.f32 %v828, %v829
        %v831 = vrot.slane %v830, 2
        %v832 = vadd.f32 %v830, %v831
        %v833 = vrot.slane %v832, 1
        %v834 = vadd.f32 %v832, %v833
        %v837 = vcombine.low %v821, %v834
        %v839 = vunpack.c.l.s4 1966171168
        %v840 = vunpack.c.0.s8 %v839
        %v841 = vlaneseq
        %v842 = vshrl.u32 %v841, 7
        %v843 = vsub.s32 %v840, %v842
        %v844 = vrot.slane %v837, %v843
        %v846 = vunpack.c.l.s4 1966171168
        %v847 = vunpack.c.0.s8 %v846
        %v848 = vlaneseq
        %v849 = vshrl.u32 %v848, 7
        %v850 = vsub.s32 %v847, %v849
        %v851 = vrot.slane %v844, %v850
        %v853 = vadd.f32 %v736, %v851
        %v854 = vlaneseq
        %vm855 = vcmp.ge.s32.totalorder %v854, 0
        %vm856 = vcmp.lt.s32.totalorder %v854, 256
        %vm857 = vmand %vm855, %vm856
        %858 = vst.msk [vmem:[#allocation2] sm:$0x3] %vm857, %v853
        %859 = vst.msk [vmem:[#allocation3] sm:$0x1] %vm724, %v665
        %p860 = scmp.eq.s32.totalorder %s29, 3
        // Predicated region
        $region61: #{tpu_custom_call.1} parent=43 // pred_check
          %p861 = pneg %p860
        $region62: #{tpu_custom_call.1} parent=43 // pred_check_branch
          %863 = sbr.rel (%p861) target = $region64
        $region63: #{tpu_custom_call.1} parent=43 // pred_region
          %v864 = vld [vmem:[#allocation2] sm:$0x3]
          %v865 = vld [vmem:[#allocation4] sm:$0x1]
          %v866 = vrcp.pop %v865
          %868 = vset.pattern.permute.xlu0 0
          %869 = vperm.xlu0 %868, %v866
          %v870 = vpop.permute.xlu0 %869
          %v872 = vlaneseq
          %v873 = vshrl.u32 %v872, 7
          %v874 = vsub.s32 0, %v873
          %v875 = vrot.slane %v870, %v874
          %v876 = vmul.f32 %v864, %v875
          %v878 = vlaneseq
          %v879 = vshrl.u32 %v878, 7
          %v880 = vsub.s32 0, %v879
          %v881 = vrot.slane %v876, %v880
          %v882 = vlaneseq
          %v883 = vshrl.u32 %v882, 7
          %v884 = vsub.s32 1, %v883
          %v885 = vrot.slane %v876, %v884
          %v888 = vpack.c.bf16 %v881, %v881
          %v889 = vpack.c.bf16 %v885, %v885
          %v890 = vld [vmem:[#allocation10] sm:$0xf]
          %v891 = vld [vmem:[#allocation10 + $0x4] sm:$0xf]
          %v892 = vld [vmem:[#allocation10 + $0x8] sm:$0xf]
          %v893 = vld [vmem:[#allocation10 + $0xc] sm:$0xf]
          %v894 = vld [vmem:[#allocation10 + $0x10] sm:$0xf]
          %v895 = vld [vmem:[#allocation10 + $0x14] sm:$0xf]
          %v896 = vld [vmem:[#allocation10 + $0x18] sm:$0xf]
          %v897 = vld [vmem:[#allocation10 + $0x1c] sm:$0xf]
          %v898 = vld [vmem:[#allocation10 + $0x20] sm:$0xf]
          %v899 = vld [vmem:[#allocation10 + $0x24] sm:$0xf]
          %v900 = vld [vmem:[#allocation10 + $0x28] sm:$0xf]
          %v901 = vld [vmem:[#allocation10 + $0x2c] sm:$0xf]
          %v902 = vld [vmem:[#allocation10 + $0x30] sm:$0xf]
          %v903 = vld [vmem:[#allocation10 + $0x34] sm:$0xf]
          %v904 = vld [vmem:[#allocation10 + $0x38] sm:$0xf]
          %v905 = vld [vmem:[#allocation10 + $0x3c] sm:$0xf]
          %v906 = vld [vmem:[#allocation10 + $0x40] sm:$0xf]
          %v907 = vld [vmem:[#allocation10 + $0x44] sm:$0xf]
          %v908 = vld [vmem:[#allocation10 + $0x48] sm:$0xf]
          %v909 = vld [vmem:[#allocation10 + $0x4c] sm:$0xf]
          %v910 = vld [vmem:[#allocation10 + $0x50] sm:$0xf]
          %v911 = vld [vmem:[#allocation10 + $0x54] sm:$0xf]
          %v912 = vld [vmem:[#allocation10 + $0x58] sm:$0xf]
          %v913 = vld [vmem:[#allocation10 + $0x5c] sm:$0xf]
          %v914 = vld [vmem:[#allocation10 + $0x60] sm:$0xf]
          %v915 = vld [vmem:[#allocation10 + $0x64] sm:$0xf]
          %v916 = vld [vmem:[#allocation10 + $0x68] sm:$0xf]
          %v917 = vld [vmem:[#allocation10 + $0x6c] sm:$0xf]
          %v918 = vld [vmem:[#allocation10 + $0x70] sm:$0xf]
          %v919 = vld [vmem:[#allocation10 + $0x74] sm:$0xf]
          %v920 = vld [vmem:[#allocation10 + $0x78] sm:$0xf]
          %v921 = vld [vmem:[#allocation10 + $0x7c] sm:$0xf]
          %v922 = vld [vmem:[%s5] sm:$0x1]
          %v955 = vunpack.c.l.b16 %v890
          %v956 = vunpack.c.l.b16 %v891
          %v957 = vunpack.c.l.b16 %v892
          %v958 = vunpack.c.l.b16 %v893
          %v959 = vunpack.c.l.b16 %v894
          %v960 = vunpack.c.l.b16 %v895
          %v961 = vunpack.c.l.b16 %v896
          %v962 = vunpack.c.l.b16 %v897
          %v963 = vunpack.c.l.b16 %v898
          %v964 = vunpack.c.l.b16 %v899
          %v965 = vunpack.c.l.b16 %v900
          %v966 = vunpack.c.l.b16 %v901
          %v967 = vunpack.c.l.b16 %v902
          %v968 = vunpack.c.l.b16 %v903
          %v969 = vunpack.c.l.b16 %v904
          %v970 = vunpack.c.l.b16 %v905
          %v971 = vunpack.c.l.b16 %v906
          %v972 = vunpack.c.l.b16 %v907
          %v973 = vunpack.c.l.b16 %v908
          %v974 = vunpack.c.l.b16 %v909
          %v975 = vunpack.c.l.b16 %v910
          %v976 = vunpack.c.l.b16 %v911
          %v977 = vunpack.c.l.b16 %v912
          %v978 = vunpack.c.l.b16 %v913
          %v979 = vunpack.c.l.b16 %v914
          %v980 = vunpack.c.l.b16 %v915
          %v981 = vunpack.c.l.b16 %v916
          %v982 = vunpack.c.l.b16 %v917
          %v983 = vunpack.c.l.b16 %v918
          %v984 = vunpack.c.l.b16 %v919
          %v985 = vunpack.c.l.b16 %v920
          %v986 = vunpack.c.l.b16 %v921
          %v987 = vpack.c.b16 %v956, %v955
          %v988 = vpack.c.b16 %v958, %v957
          %v989 = vpack.c.b16 %v960, %v959
          %v990 = vpack.c.b16 %v962, %v961
          %v991 = vpack.c.b16 %v964, %v963
          %v992 = vpack.c.b16 %v966, %v965
          %v993 = vpack.c.b16 %v968, %v967
          %v994 = vpack.c.b16 %v970, %v969
          %v995 = vpack.c.b16 %v972, %v971
          %v996 = vpack.c.b16 %v974, %v973
          %v997 = vpack.c.b16 %v976, %v975
          %v998 = vpack.c.b16 %v978, %v977
          %v999 = vpack.c.b16 %v980, %v979
          %v1000 = vpack.c.b16 %v982, %v981
          %v1001 = vpack.c.b16 %v984, %v983
          %v1002 = vpack.c.b16 %v986, %v985
          %1019 = vmatprep.subr.bf16.mxu0 0
          %1020 = vmatpush1.bf16.msra.mxu0 %v987
          %1021 = vmatprep.subr.bf16.mxu0 0
          %1022 = vmatpush1.bf16.msra.mxu0 %v988
          %1023 = vmatprep.subr.bf16.mxu0 0
          %1024 = vmatpush1.bf16.msra.mxu0 %v989
          %1025 = vmatprep.subr.bf16.mxu0 0
          %1026 = vmatpush1.bf16.msra.mxu0 %v990
          %1027 = vmatprep.subr.bf16.mxu0 0
          %1028 = vmatpush1.bf16.msra.mxu0 %v991
          %1029 = vmatprep.subr.bf16.mxu0 0
          %1030 = vmatpush1.bf16.msra.mxu0 %v992
          %1031 = vmatprep.subr.bf16.mxu0 0
          %1032 = vmatpush1.bf16.msra.mxu0 %v993
          %1033 = vmatprep.subr.bf16.mxu0 0
          %1034 = vmatpush1.bf16.msra.mxu0 %v994
          %1035 = vmatprep.subr.bf16.mxu0 0
          %1036 = vmatpush1.bf16.msra.mxu0 %v995
          %1037 = vmatprep.subr.bf16.mxu0 0
          %1038 = vmatpush1.bf16.msra.mxu0 %v996
          %1039 = vmatprep.subr.bf16.mxu0 0
          %1040 = vmatpush1.bf16.msra.mxu0 %v997
          %1041 = vmatprep.subr.bf16.mxu0 0
          %1042 = vmatpush1.bf16.msra.mxu0 %v998
          %1043 = vmatprep.subr.bf16.mxu0 0
          %1044 = vmatpush1.bf16.msra.mxu0 %v999
          %1045 = vmatprep.subr.bf16.mxu0 0
          %1046 = vmatpush1.bf16.msra.mxu0 %v1000
          %1047 = vmatprep.subr.bf16.mxu0 0
          %1048 = vmatpush1.bf16.msra.mxu0 %v1001
          %1049 = vmatprep.subr.bf16.mxu0 0
          %1050 = vmatpush1.bf16.msra.mxu0 %v1002
          %1051 = vmatprep.mubr.bf16.mxu0 %v889
          %1052 = vmatmul.mubr.bf16.gmra.mrb[0].mxu0 %v888
          %v1053 = vpop.f32.mrb[0].mxu0
          %v1054 = vadd.f32 %v922, %v1053
          %v1055 = vpop.f32.mrb[0].mxu0
          %v1056 = vpop.f32.mrb[0].mxu0
          %v1057 = vpop.f32.mrb[0].mxu0
          %1058 = vdwg.mxu0
          %1059 = vst [vmem:[%s314] sm:$0x1] %v1054
        $region64: #{tpu_custom_call.1} parent=43 // pred_fallthru
          _
        %s1060 = sand.u32 %s177, 1
        %s1061 = scalar_lea.sflag [#allocation7], %s1060
        %s1062 = sand.u32 %s177, 1
        %s1063 = scalar_lea.vmem [#allocation11], %s1062
        // Predicated region
        $region65: #{tpu_custom_call.1} parent=43 // pred_check
          %p1064 = pneg %p187
        $region66: #{tpu_custom_call.1} parent=43 // pred_check_branch
          %1066 = sbr.rel (%p1064) target = $region68
        $region67: #{tpu_custom_call.1} parent=43 // pred_region
          %s1068 = ssub.s32 16, 16
          %1069 = vsyncadd %s1061, %s1068
          %s1070 = smul.addr %s28, 16
          %s1071 = scalar_lea.hbm %s6, %s1070
          %s1073 = sshll.u32 %s1063, 4
          %s1074 = int_to_ptr.vmem [resolvable:$true] %s1073
          %1076 = dma.vmem_to_hbm [thread:$0]  %s1074, 16, %s1071, %s1061
        $region68: #{tpu_custom_call.1} parent=43 // pred_fallthru
          _
      $region44: #{tpu_custom_call.1} parent=5 // pred_fallthru
        _
      %p1077 = scmp.le.s32.totalorder 2, %s19
      // Predicated region
      $region69: #{tpu_custom_call.1} parent=5 // pred_check
        %p1078 = pneg %p1077
      $region70: #{tpu_custom_call.1} parent=5 // pred_check_branch
        %1080 = sbr.rel (%p1078) target = $region72
      $region71: #{tpu_custom_call.1} parent=5 // pred_region
        %s1081 = ssub.s32 %s19, 2
        // Predicated region
        $region73: #{tpu_custom_call.1} parent=71 // pred_check
          %p1082 = pneg %p193
        $region74: #{tpu_custom_call.1} parent=71 // pred_check_branch
          %1084 = sbr.rel (%p1082) target = $region76
        $region75: #{tpu_custom_call.1} parent=71 // pred_region
          %s1085 = sand.u32 %s178, 1
          %s1086 = scalar_lea.sflag [#allocation7], %s1085
          %s1087 = sand.u32 %s178, 1
          %s1088 = scalar_lea.vmem [#allocation11], %s1087
          %1089 = dma.done %s1086, 16
        $region76: #{tpu_custom_call.1} parent=71 // pred_fallthru
          _
      $region72: #{tpu_custom_call.1} parent=5 // pred_fallthru
        _
    $region6: #{tpu_custom_call.1} parent=1 // loop_footer
      %s23 = sadd.s32 1, %s19
    $region7: #{tpu_custom_call.1} parent=1 // loop_footer_branch
      %18 = sbr.rel target = $region3
    $region8: #{tpu_custom_call.1} parent=1 // loop_exit
      _
    %1090 = vsyncpa [#allocation6], 1
    %s1091 = scalar_lea.sflag [#allocation6], 1
    %1092 = vsyncpa %s1091, 1
    %1093 = vsyncpa [#allocation9], 1
    %1094 = vsyncpa [#allocation7], 1
    %s1095 = scalar_lea.sflag [#allocation7], 1
    %1096 = vsyncpa %s1095, 1

</llo_original>
